<compile_context>
chip_gen: v7x
topology: tpu7x:2x2x1
jax: 0.10.0
libtpu: 0.0.40
codegen_flags: <defaults>
</compile_context>

<pallas_src>
from functools import partial

import jax
import jax.numpy as jnp
from jax.experimental import pallas as pl
from jax.experimental.pallas import tpu as pltpu


def _round_up(x, m):
    return ((x + m - 1) // m) * m


def make_cnnblock_kernel(n_taps, tile, c_out_p, c_out):
    def kernel(xa_ref, xh_ref, wq_ref, w2_ref, w3_ref,
               sh1t_ref, sh2_ref, sh3_ref, o_ref):
        xa = xa_ref[0]                                   # (CINS, TILE) bf16

        # Fused conv1 + shortcut: sum over the Q deinterleaved taps.  Tap 0
        # uses the tile as-is; taps q>0 are unit shifts into the 128-lane halo
        # (contiguous slices of [tile | halo] -> no strided loads).
        y = jnp.dot(wq_ref[0], xa, preferred_element_type=jnp.float32)
        if n_taps > 1:
            xw = jnp.concatenate([xa, xh_ref[0]], axis=-1)   # (CINS, TILE+128)
            for q in range(1, n_taps):
                y = y + jnp.dot(wq_ref[q], xw[:, q:q + tile],
                                preferred_element_type=jnp.float32)
        y = y + sh1t_ref[...]                            # folded BN shifts [bn1 ; bnt]

        h = jnp.maximum(y[:c_out_p], 0.0)                # conv1 + bn1 + relu (aligned split)
        sc = y[c_out_p:]                                 # shortcut (convt + bnt)

        # conv2 (1x1) + bn2 + relu
        h2 = jnp.dot(w2_ref[...], h.astype(jnp.bfloat16),
                     preferred_element_type=jnp.float32) + sh2_ref[...]
        h2 = jnp.maximum(h2, 0.0)

        # conv3 (1x1) + bn3
        h3 = jnp.dot(w3_ref[...], h2.astype(jnp.bfloat16),
                     preferred_element_type=jnp.float32) + sh3_ref[...]

        # residual add + relu; drop channel padding; lane-dense store
        o_ref[0] = jnp.maximum(h3 + sc, 0.0)[:c_out].astype(o_ref.dtype)

    return kernel


@partial(jax.jit, static_argnames=("filter_size", "stride", "out_dtype"))
def cnnblock_forward(x, params, *, filter_size, stride, out_dtype=None):
    B, C_IN, L = x.shape
    K = filter_size
    S = stride
    pad = K // 2
    C_OUT = params["w1"].shape[0]
    out_dtype = x.dtype if out_dtype is None else out_dtype

    L_OUT = (L + 2 * pad - K) // S + 1
    L_OUT_T = (L - 1) // S + 1
    # Requires conv1 and convt (shortcut) output lengths to match (odd K).
    assert L_OUT == L_OUT_T, "conv1 and convt output lengths must match"

    eps = 1e-5

    def bn_fold(g, b, m, v):
        s = g / jnp.sqrt(v + eps)
        return s, b - m * s

    s1, b1 = bn_fold(*params["bn1"])
    s2, b2 = bn_fold(*params["bn2"])
    s3, b3 = bn_fold(*params["bn3"])
    st, bt = bn_fold(*params["bnt"])

    # ---- padded channel counts: sublane-aligned branch split / row blocks ---
    COP = _round_up(C_OUT, 8)          # conv1 / shortcut / conv3 rows
    C2P = _round_up(2 * C_OUT, 8)      # conv2 rows
    CINS = C_IN * S                    # stride-deinterleaved input channels
    Q = -(-K // S)                     # taps remaining after deinterleave

    # ---- fold BN scales into conv weights; per-tap stacked [conv1 ; wt] -----
    w1s = params["w1"] * s1[:, None, None]               # (C_OUT, C_IN, K)
    wts = params["wt"] * st[:, None]                     # (C_OUT, C_IN)
    w1pad = jnp.pad(w1s, ((0, 0), (0, 0), (0, Q * S - K)))
    w1q = w1pad.reshape(C_OUT, C_IN, Q, S).transpose(2, 0, 1, 3)
    w1q = w1q.reshape(Q, C_OUT, CINS)                    # W_q[:, c*S + r] = w1[:, c, q*S+r]
    wq = jnp.zeros((Q, 2 * COP, CINS), jnp.float32)
    wq = wq.at[:, :C_OUT, :].set(w1q)
    qs, rs = divmod(pad, S)                              # shortcut = tap `pad`
    wq = wq.at[qs, COP:COP + C_OUT, rs::S].set(wts)

    w2f = jnp.zeros((C2P, COP), jnp.float32).at[:2 * C_OUT, :C_OUT].set(
        params["w2"] * s2[:, None])
    w3f = jnp.zeros((COP, C2P), jnp.float32).at[:C_OUT, :2 * C_OUT].set(
        params["w3"] * s3[:, None])

    sh1t = jnp.zeros((2 * COP,), jnp.float32)
    sh1t = sh1t.at[:C_OUT].set(b1).at[COP:COP + C_OUT].set(bt).reshape(2 * COP, 1)
    sh2 = jnp.zeros((C2P,), jnp.float32).at[:2 * C_OUT].set(b2).reshape(C2P, 1)
    sh3 = jnp.zeros((COP,), jnp.float32).at[:C_OUT].set(b3).reshape(COP, 1)

    # ---- lane tile: big (amortize grid-step overhead), VMEM-budgeted, and ---
    # ---- >= 2 grid steps when possible so v7x's two TensorCores get work. ---
    out_bytes = jnp.dtype(out_dtype).itemsize
    per_lane = (2 * 2 * CINS                      # x tile, double-buffered, bf16
                + 2 * out_bytes * C_OUT           # out tile, double-buffered
                + 4 * (2 * COP + COP + C2P + COP)  # f32 intermediates
                + 2 * (COP + C2P + CINS))         # bf16 casts + halo concat
    vmem_budget = 20 * 2 ** 20                    # headroom vs v7x 32MiB scoped
    tile = min(32768,
               max(128, (vmem_budget // per_lane) // 128 * 128),
               pl.cdiv(L_OUT, 128) * 128)
    if B * pl.cdiv(L_OUT, tile) < 2 and L_OUT > 128:
        tile = pl.cdiv(pl.cdiv(L_OUT, 2), 128) * 128
    n_l = pl.cdiv(L_OUT, tile)
    L_OUT_pad = n_l * tile

    # ---- stride-deinterleaved input operand (same size as x; no K-fold ------
    # ---- im2col in HBM).  128 extra columns serve as the cross-tile halo. ---
    L_half = L_OUT_pad + 128
    Lp = S * L_half
    right = Lp - L - pad
    assert right >= 0
    x_p = jnp.pad(x.astype(jnp.bfloat16), ((0, 0), (0, 0), (pad, right)))
    x_d = x_p.reshape(B, C_IN, L_half, S).transpose(0, 1, 3, 2)
    x_d = x_d.reshape(B, CINS, L_half)     # row c*S + p = phase p of channel c

    kernel = make_cnnblock_kernel(Q, tile, COP, C_OUT)

    out_padded = pl.pallas_call(
        kernel,
        out_shape=jax.ShapeDtypeStruct((B, C_OUT, L_OUT_pad), out_dtype),
        grid=(B, n_l),
        in_specs=[
            pl.BlockSpec((1, CINS, tile), lambda b, l: (b, 0, l)),        # x tile
            pl.BlockSpec((1, CINS, 128),                                  # halo
                         lambda b, l: (b, 0, (l + 1) * (tile // 128))),
            pl.BlockSpec((Q, 2 * COP, CINS), lambda b, l: (0, 0, 0)),     # [w1 ; wt]
            pl.BlockSpec((C2P, COP), lambda b, l: (0, 0)),                # w2
            pl.BlockSpec((COP, C2P), lambda b, l: (0, 0)),                # w3
            pl.BlockSpec((2 * COP, 1), lambda b, l: (0, 0)),              # bn1|bnt shifts
            pl.BlockSpec((C2P, 1), lambda b, l: (0, 0)),                  # bn2 shift
            pl.BlockSpec((COP, 1), lambda b, l: (0, 0)),                  # bn3 shift
        ],
        out_specs=pl.BlockSpec((1, C_OUT, tile), lambda b, l: (b, 0, l)),
        compiler_params=pltpu.CompilerParams(
            dimension_semantics=("parallel", "parallel")),
    )(x_d,
      x_d,                              # same array; second spec is the halo view
      wq.astype(jnp.bfloat16),
      w2f.astype(jnp.bfloat16),
      w3f.astype(jnp.bfloat16),
      sh1t, sh2, sh3)

    # Only the length padding is sliced off (contiguous); no transpose pass.
    return out_padded[:, :, :L_OUT]


# ---------------- pure-JAX reference (for correctness check) ----------------
def cnnblock_reference(x, params, *, filter_size, stride):
    eps = 1e-5

    def conv1d(x, w, s, p):
        return jax.lax.conv_general_dilated(
            x, w, window_strides=(s,), padding=[(p, p)],
            dimension_numbers=("NCH", "OIH", "NCH"))

    def bn(x, g, b, m, v):
        return (g[None, :, None] * (x - m[None, :, None])
                / jnp.sqrt(v[None, :, None] + eps) + b[None, :, None])

    w1, w2, w3, wt = params["w1"], params["w2"], params["w3"], params["wt"]
    shortcut = bn(conv1d(x, wt[:, :, None], stride, 0), *params["bnt"])
    h = jax.nn.relu(bn(conv1d(x, w1, stride, filter_size // 2), *params["bn1"]))
    h = jax.nn.relu(bn(conv1d(h, w2[:, :, None], 1, 0), *params["bn2"]))
    h = bn(conv1d(h, w3[:, :, None], 1, 0), *params["bn3"])
    return jax.nn.relu(h + shortcut)


# --------------------------------- test --------------------------------------
def _make_params(key, c_in, c_out, k):
    ks = jax.random.split(key, 20)

    def bn_params(k0, k1, k2, k3, c):
        gamma = jax.random.uniform(k0, (c,), jnp.float32, 0.5, 1.5)
        beta = 0.1 * jax.random.normal(k1, (c,), jnp.float32)
        mean = 0.1 * jax.random.normal(k2, (c,), jnp.float32)
        var = jax.random.uniform(k3, (c,), jnp.float32, 0.5, 1.5)
        return (gamma, beta, mean, var)

    return {
        "w1": 0.2 * jax.random.normal(ks[0], (c_out, c_in, k), jnp.float32),
        "w2": 0.2 * jax.random.normal(ks[1], (2 * c_out, c_out), jnp.float32),
        "w3": 0.2 * jax.random.normal(ks[2], (c_out, 2 * c_out), jnp.float32),
        "wt": 0.2 * jax.random.normal(ks[3], (c_out, c_in), jnp.float32),
        "bn1": bn_params(ks[4], ks[5], ks[6], ks[7], c_out),
        "bn2": bn_params(ks[8], ks[9], ks[10], ks[11], 2 * c_out),
        "bn3": bn_params(ks[12], ks[13], ks[14], ks[15], c_out),
        "bnt": bn_params(ks[16], ks[17], ks[18], ks[19], c_out),
    }


def _run_case(key, b, c_in, c_out, length, k, s):
    kp, kx = jax.random.split(key)
    params = _make_params(kp, c_in, c_out, k)
    x = jax.random.normal(kx, (b, c_in, length), jnp.float32)

    out = jax.block_until_ready(
        cnnblock_forward(x, params, filter_size=k, stride=s))
    ref = jax.block_until_ready(
        cnnblock_reference(x, params, filter_size=k, stride=s))

    assert out.shape == ref.shape, (out.shape, ref.shape)
    # bf16 matmul inputs / intermediates -> ~1e-2-scale tolerance.
    err = float(jnp.max(jnp.abs(out - ref)))
    assert jnp.allclose(out, ref, rtol=3e-2, atol=3e-2), err


if __name__ == "__main__":
    key = jax.random.PRNGKey(0)
    k1, k2 = jax.random.split(key)

    # Small shapes consistent with the module (batch=2, channels=4, length=16).
    _run_case(k1, b=2, c_in=4, c_out=8, length=16, k=3, s=2)
    # Multi-tile case: exercises the cross-tile halo path, Q=3 deinterleaved
    # taps (K=5, stride=2) and the forced >=2 grid steps for B==1 (v7x).
    _run_case(k2, b=1, c_in=3, c_out=8, length=600, k=5, s=2)

    print("KERNEL_OK")
</pallas_src>

<mosaic_0001>
module attributes {stable_mosaic.version = 11 : i64} {
  func.func @kernel(%arg0: i32, %arg1: i32, %arg2: memref<1x8x128xbf16, #tpu.memory_space<vmem>>, %arg3: memref<1x8x128xbf16, #tpu.memory_space<vmem>>, %arg4: memref<2x16x8xbf16, #tpu.memory_space<vmem>>, %arg5: memref<16x8xbf16, #tpu.memory_space<vmem>>, %arg6: memref<8x16xbf16, #tpu.memory_space<vmem>>, %arg7: memref<16x1xf32, #tpu.memory_space<vmem>>, %arg8: memref<16x1xf32, #tpu.memory_space<vmem>>, %arg9: memref<8x1xf32, #tpu.memory_space<vmem>>, %arg10: memref<1x8x128xf32, #tpu.memory_space<vmem>>) attributes {dimension_semantics = [#tpu.dimension_semantics<parallel>, #tpu.dimension_semantics<parallel>], iteration_bounds = array<i64: 2, 1>, scalar_prefetch = 0 : i64, scratch_operands = 0 : i64, tpu.core_type = #tpu.core_type<tc>, window_params = [{transform_indices = @transform_0, window_bounds = array<i64: 1, 8, 128>}, {transform_indices = @transform_1, window_bounds = array<i64: 1, 8, 128>}, {pipeline_mode = #tpu.pipeline_mode<synchronous>, transform_indices = @transform_2, window_bounds = array<i64: 2, 16, 8>}, {pipeline_mode = #tpu.pipeline_mode<synchronous>, transform_indices = @transform_3, window_bounds = array<i64: 16, 8>}, {pipeline_mode = #tpu.pipeline_mode<synchronous>, transform_indices = @transform_4, window_bounds = array<i64: 8, 16>}, {pipeline_mode = #tpu.pipeline_mode<synchronous>, transform_indices = @transform_5, window_bounds = array<i64: 16, 1>}, {pipeline_mode = #tpu.pipeline_mode<synchronous>, transform_indices = @transform_6, window_bounds = array<i64: 16, 1>}, {pipeline_mode = #tpu.pipeline_mode<synchronous>, transform_indices = @transform_7, window_bounds = array<i64: 8, 1>}, {transform_indices = @transform_8, window_bounds = array<i64: 1, 8, 128>}]} {
    %c0 = arith.constant 0 : index
    %c0_0 = arith.constant 0 : index
    %c0_1 = arith.constant 0 : index
    %0 = vector.load %arg2[%c0, %c0_0, %c0_1] : memref<1x8x128xbf16, #tpu.memory_space<vmem>>, vector<1x8x128xbf16>
    %1 = vector.shape_cast %0 : vector<1x8x128xbf16> to vector<8x128xbf16>
    %c0_2 = arith.constant 0 : index
    %c0_3 = arith.constant 0 : index
    %c0_4 = arith.constant 0 : index
    %2 = vector.load %arg4[%c0_2, %c0_3, %c0_4] : memref<2x16x8xbf16, #tpu.memory_space<vmem>>, vector<1x16x8xbf16>
    %3 = vector.shape_cast %2 : vector<1x16x8xbf16> to vector<16x8xbf16>
    %cst = arith.constant dense<0.000000e+00> : vector<16x128xf32>
    %4 = tpu.matmul %3, %1, %cst {dimension_numbers = #tpu.dot_dimension_numbers<[1], [0], [0], [1], [0, 0, 1, 1], [], []>} : vector<16x8xbf16>, vector<8x128xbf16>, vector<16x128xf32> -> vector<16x128xf32>
    %c0_5 = arith.constant 0 : index
    %c0_6 = arith.constant 0 : index
    %c0_7 = arith.constant 0 : index
    %5 = vector.load %arg3[%c0_5, %c0_6, %c0_7] : memref<1x8x128xbf16, #tpu.memory_space<vmem>>, vector<1x8x128xbf16>
    %6 = vector.shape_cast %5 : vector<1x8x128xbf16> to vector<8x128xbf16>
    %7 = tpu.concatenate %1, %6 in 1 : vector<8x128xbf16>, vector<8x128xbf16> -> vector<8x256xbf16>
    %c1 = arith.constant 1 : index
    %c0_8 = arith.constant 0 : index
    %c0_9 = arith.constant 0 : index
    %8 = vector.load %arg4[%c1, %c0_8, %c0_9] : memref<2x16x8xbf16, #tpu.memory_space<vmem>>, vector<1x16x8xbf16>
    %9 = vector.shape_cast %8 : vector<1x16x8xbf16> to vector<16x8xbf16>
    %10 = vector.extract_strided_slice %7 {offsets = [0, 1], sizes = [8, 128], strides = [1, 1]} : vector<8x256xbf16> to vector<8x128xbf16>
    %cst_10 = arith.constant dense<0.000000e+00> : vector<16x128xf32>
    %11 = tpu.matmul %9, %10, %cst_10 {dimension_numbers = #tpu.dot_dimension_numbers<[1], [0], [0], [1], [0, 0, 1, 1], [], []>} : vector<16x8xbf16>, vector<8x128xbf16>, vector<16x128xf32> -> vector<16x128xf32>
    %12 = arith.addf %4, %11 : vector<16x128xf32>
    %c0_11 = arith.constant 0 : index
    %c0_12 = arith.constant 0 : index
    %13 = vector.load %arg7[%c0_11, %c0_12] : memref<16x1xf32, #tpu.memory_space<vmem>>, vector<16x1xf32>
    %14 = vector.broadcast %13 : vector<16x1xf32> to vector<16x128xf32>
    %15 = arith.addf %12, %14 : vector<16x128xf32>
    %16 = vector.extract_strided_slice %15 {offsets = [0, 0], sizes = [8, 128], strides = [1, 1]} : vector<16x128xf32> to vector<8x128xf32>
    %cst_13 = arith.constant 0.000000e+00 : f32
    %17 = vector.broadcast %cst_13 : f32 to vector<8x128xf32>
    %18 = arith.maximumf %16, %17 : vector<8x128xf32>
    %19 = vector.extract_strided_slice %15 {offsets = [8, 0], sizes = [8, 128], strides = [1, 1]} : vector<16x128xf32> to vector<8x128xf32>
    %c0_14 = arith.constant 0 : index
    %c0_15 = arith.constant 0 : index
    %20 = vector.load %arg5[%c0_14, %c0_15] : memref<16x8xbf16, #tpu.memory_space<vmem>>, vector<16x8xbf16>
    %21 = arith.truncf %18 : vector<8x128xf32> to vector<8x128xbf16>
    %cst_16 = arith.constant dense<0.000000e+00> : vector<16x128xf32>
    %22 = tpu.matmul %20, %21, %cst_16 {dimension_numbers = #tpu.dot_dimension_numbers<[1], [0], [0], [1], [0, 0, 1, 1], [], []>} : vector<16x8xbf16>, vector<8x128xbf16>, vector<16x128xf32> -> vector<16x128xf32>
    %c0_17 = arith.constant 0 : index
    %c0_18 = arith.constant 0 : index
    %23 = vector.load %arg8[%c0_17, %c0_18] : memref<16x1xf32, #tpu.memory_space<vmem>>, vector<16x1xf32>
    %24 = vector.broadcast %23 : vector<16x1xf32> to vector<16x128xf32>
    %25 = arith.addf %22, %24 : vector<16x128xf32>
    %cst_19 = arith.constant 0.000000e+00 : f32
    %26 = vector.broadcast %cst_19 : f32 to vector<16x128xf32>
    %27 = arith.maximumf %25, %26 : vector<16x128xf32>
    %c0_20 = arith.constant 0 : index
    %c0_21 = arith.constant 0 : index
    %28 = vector.load %arg6[%c0_20, %c0_21] : memref<8x16xbf16, #tpu.memory_space<vmem>>, vector<8x16xbf16>
    %29 = arith.truncf %27 : vector<16x128xf32> to vector<16x128xbf16>
    %cst_22 = arith.constant dense<0.000000e+00> : vector<8x128xf32>
    %30 = tpu.matmul %28, %29, %cst_22 {dimension_numbers = #tpu.dot_dimension_numbers<[1], [0], [0], [1], [0, 0, 1, 1], [], []>} : vector<8x16xbf16>, vector<16x128xbf16>, vector<8x128xf32> -> vector<8x128xf32>
    %c0_23 = arith.constant 0 : index
    %c0_24 = arith.constant 0 : index
    %31 = vector.load %arg9[%c0_23, %c0_24] : memref<8x1xf32, #tpu.memory_space<vmem>>, vector<8x1xf32>
    %32 = vector.broadcast %31 : vector<8x1xf32> to vector<8x128xf32>
    %33 = arith.addf %30, %32 : vector<8x128xf32>
    %34 = arith.addf %33, %19 : vector<8x128xf32>
    %cst_25 = arith.constant 0.000000e+00 : f32
    %35 = vector.broadcast %cst_25 : f32 to vector<8x128xf32>
    %36 = arith.maximumf %34, %35 : vector<8x128xf32>
    %c0_26 = arith.constant 0 : index
    %c0_27 = arith.constant 0 : index
    %c0_28 = arith.constant 0 : index
    %37 = vector.load %arg10[%c0_26, %c0_27, %c0_28] : memref<1x8x128xf32, #tpu.memory_space<vmem>>, vector<1x8x128xf32>
    %38 = vector.shape_cast %37 : vector<1x8x128xf32> to vector<8x128xf32>
    %39 = vector.shape_cast %36 : vector<8x128xf32> to vector<1x8x128xf32>
    tpu.vector_store %arg10[%c0_26, %c0_27, %c0_28], %39 {strides = array<i32>} : memref<1x8x128xf32, #tpu.memory_space<vmem>>, vector<1x8x128xf32>,
    return
  }
  func.func @transform_0(%arg0: i32, %arg1: i32) -> (i32, i32, i32) {
    %c0_i32 = arith.constant 0 : i32
    %c0_i32_0 = arith.constant 0 : i32
    return %arg0, %c0_i32, %arg1 : i32, i32, i32
  }
  func.func @transform_1(%arg0: i32, %arg1: i32) -> (i32, i32, i32) {
    %c1_i32 = arith.constant 1 : i32
    %0 = arith.addi %arg1, %c1_i32 : i32
    %c1_i32_0 = arith.constant 1 : i32
    %1 = arith.muli %0, %c1_i32_0 : i32
    %c0_i32 = arith.constant 0 : i32
    %c0_i32_1 = arith.constant 0 : i32
    return %arg0, %c0_i32, %1 : i32, i32, i32
  }
  func.func @transform_2(%arg0: i32, %arg1: i32) -> (i32, i32, i32) {
    %c0_i32 = arith.constant 0 : i32
    %c0_i32_0 = arith.constant 0 : i32
    %c0_i32_1 = arith.constant 0 : i32
    %c0_i32_2 = arith.constant 0 : i32
    return %c0_i32, %c0_i32_0, %c0_i32_1 : i32, i32, i32
  }
  func.func @transform_3(%arg0: i32, %arg1: i32) -> (i32, i32) {
    %c0_i32 = arith.constant 0 : i32
    %c0_i32_0 = arith.constant 0 : i32
    %c0_i32_1 = arith.constant 0 : i32
    return %c0_i32, %c0_i32_0 : i32, i32
  }
  func.func @transform_4(%arg0: i32, %arg1: i32) -> (i32, i32) {
    %c0_i32 = arith.constant 0 : i32
    %c0_i32_0 = arith.constant 0 : i32
    %c0_i32_1 = arith.constant 0 : i32
    return %c0_i32, %c0_i32_0 : i32, i32
  }
  func.func @transform_5(%arg0: i32, %arg1: i32) -> (i32, i32) {
    %c0_i32 = arith.constant 0 : i32
    %c0_i32_0 = arith.constant 0 : i32
    %c0_i32_1 = arith.constant 0 : i32
    return %c0_i32, %c0_i32_0 : i32, i32
  }
  func.func @transform_6(%arg0: i32, %arg1: i32) -> (i32, i32) {
    %c0_i32 = arith.constant 0 : i32
    %c0_i32_0 = arith.constant 0 : i32
    %c0_i32_1 = arith.constant 0 : i32
    return %c0_i32, %c0_i32_0 : i32, i32
  }
  func.func @transform_7(%arg0: i32, %arg1: i32) -> (i32, i32) {
    %c0_i32 = arith.constant 0 : i32
    %c0_i32_0 = arith.constant 0 : i32
    %c0_i32_1 = arith.constant 0 : i32
    return %c0_i32, %c0_i32_0 : i32, i32
  }
  func.func @transform_8(%arg0: i32, %arg1: i32) -> (i32, i32, i32) {
    %c0_i32 = arith.constant 0 : i32
    %c0_i32_0 = arith.constant 0 : i32
    return %arg0, %c0_i32, %arg1 : i32, i32, i32
  }
}

</mosaic_0001>

<llo_original>
// kernel: cnnblock_forward.1
$region0: #{cnnblock_forward.1}
  #allocation0 [shape = 'u32[]', space=smem, size = 0x4, offset = 0x4, fixed_abs, tag = 'smem constant byte address 0x4 - core index']
  #allocation1 [shape = 'u32[144,128]{1,0:T(1,128)}', space=vmem, size = 0x12000, scoped, tag = 'internal scratch']
  %s0 = inlined_call_operand.vmem [shape: bf16[2,8,256], index: 0, kind: input, shape index: {}, may-alias: {0,1}]
  %s1 = inlined_call_operand.vmem [shape: bf16[2,8,256], index: 1, kind: input, shape index: {}, may-alias: {0,1}]
  %s2 = inlined_call_operand.vmem [shape: bf16[2,16,8], index: 2, kind: input, shape index: {}]
  %s3 = inlined_call_operand.vmem [shape: bf16[16,8], index: 3, kind: input, shape index: {}]
  %s4 = inlined_call_operand.vmem [shape: bf16[8,16], index: 4, kind: input, shape index: {}]
  %s5 = inlined_call_operand.vmem [shape: f32[16,1], index: 5, kind: input, shape index: {}]
  %s6 = inlined_call_operand.vmem [shape: f32[16,1], index: 6, kind: input, shape index: {}]
  %s7 = inlined_call_operand.vmem [shape: f32[8,1], index: 7, kind: input, shape index: {}]
  %s8 = inlined_call_operand.hbm [shape: f32[2,8,128], index: 8, kind: output, shape index: {}]
  %s9 = sld [smem:[#allocation0]]
  $region65: #{cnnblock_forward.1} parent=0
    _
  %s11 = ssub.s32 1, %s9
  %s12 = scalar_select 0, %s11, %s9
  $region1: #{cnnblock_forward.1} parent=0
    #allocation2 [shape = 'u8[8192]{0}', space=vmem, size = 0x2000, scoped, tag = 'output window, operand 0']
    #allocation3 [shape = 's32[2]{0}', space=sflag, size = 0x8, scoped, tag = 'scoped memory for cnnblock_forward.1']
    %13 = vsyncpa [#allocation3], 0
    %s14 = scalar_lea.sflag [#allocation3], 1
    %15 = vsyncpa %s14, 0
    loop: start=0, step=1, limit=4
    $region2: #{cnnblock_forward.1} parent=1 // loop_pre_header
      _
    $region3: #{cnnblock_forward.1} parent=1 // loop_header
      %s17 = sphi 0, %s21
      %p18 = scmp.ge.s32.totalorder %s17, 4
      %s24 = sphi 0, %s36
      %s25 = sphi 0, %s32
      %s26 = sphi 0, %s24
      %s27 = sphi 0, %s25
      %s28 = sphi 0, %s26
      %s29 = sphi 0, %s27
      %s41 = sphi 0, %s43
      %s44 = sphi 0, %s41
      %s45 = sphi 0, %s44
      %s61 = sphi 0, %s45
      %s71 = sphi 0, %s73
      %s74 = sphi 0, %s71
      %s75 = sphi 0, %s74
      %s91 = sphi 0, %s75
      %s95 = sphi 0, %s95
      %s97 = sphi 0, %s95
      %s98 = sphi 0, %s97
      %s112 = sphi 0, %s98
      %s116 = sphi 0, %s116
      %s118 = sphi 0, %s116
      %s119 = sphi 0, %s118
      %s133 = sphi 0, %s119
      %s137 = sphi 0, %s137
      %s139 = sphi 0, %s137
      %s140 = sphi 0, %s139
      %s154 = sphi 0, %s140
      %s158 = sphi 0, %s158
      %s160 = sphi 0, %s158
      %s161 = sphi 0, %s160
      %s175 = sphi 0, %s161
      %s179 = sphi 0, %s179
      %s181 = sphi 0, %s179
      %s182 = sphi 0, %s181
      %s196 = sphi 0, %s182
      %s200 = sphi 0, %s200
      %s202 = sphi 0, %s200
      %s203 = sphi 0, %s202
      %s217 = sphi 0, %s203
      %s225 = sphi 0, %s227
      %s228 = sphi 0, %s225
      %s229 = sphi 0, %s228
      %s245 = sphi 0, %s229
    $region4: #{cnnblock_forward.1} parent=1 // loop_header_branch
      %20 = sbr.rel (%p18) target = $region8
    $region5: #{cnnblock_forward.1} parent=1 // loop_body
      %s22 = ssub.s32 %s17, 1
      %s23 = ssub.s32 %s17, 2
      %s30 = sadd.s32 1, %s25
      %p31 = scmp.ge.s32.totalorder %s30, 1
      %s32 = scalar_select %p31, 0, %s30
      %s33 = sadd.s32 1, %s24
      %s34 = scalar_select %p31, %s33, %s24
      %p35 = scmp.ge.s32.totalorder %s34, 2
      %s36 = scalar_select %p35, 0, %s34
      %s37 = ssub.s32 %s24, %s36
      %s38 = ssub.s32 %s25, %s32
      %s39 = sor.u32 %s37, %s38
      %p40 = scmp.eq.s32.totalorder %s39, 0
      %s42 = sadd.s32 %s41, 1
      %s43 = scalar_select %p40, %s41, %s42
      %p46 = pneg %p40
      %p47 = scmp.eq.s32.totalorder %s17, 1
      %p48 = por %p46, %p47
      %p49 = scmp.ne.s32.totalorder %s41, %s44
      %p50 = scmp.eq.s32.totalorder %s17, 0
      %p51 = por %p49, %p50
      %p52 = scmp.ne.s32.totalorder %s41, %s44
      %p53 = scmp.eq.s32.totalorder %s22, 1
      %p54 = por %p52, %p53
      %p55 = scmp.ne.s32.totalorder %s44, %s45
      %p56 = scmp.eq.s32.totalorder %s22, 0
      %p57 = por %p55, %p56
      %p58 = scmp.ne.s32.totalorder %s44, %s45
      %p59 = scmp.eq.s32.totalorder %s23, 1
      %p60 = por %p58, %p59
      %p62 = scmp.ne.s32.totalorder %s45, %s61
      %p63 = scmp.eq.s32.totalorder %s23, 0
      %p64 = por %p62, %p63
      %s65 = sadd.s32 %s25, 1
      %s66 = sadd.s32 %s32, 1
      %s67 = ssub.s32 %s24, %s36
      %s68 = ssub.s32 %s65, %s66
      %s69 = sor.u32 %s67, %s68
      %p70 = scmp.eq.s32.totalorder %s69, 0
      %s72 = sadd.s32 %s71, 1
      %s73 = scalar_select %p70, %s71, %s72
      %p76 = pneg %p70
      %p77 = scmp.eq.s32.totalorder %s17, 1
      %p78 = por %p76, %p77
      %p79 = scmp.ne.s32.totalorder %s71, %s74
      %p80 = scmp.eq.s32.totalorder %s17, 0
      %p81 = por %p79, %p80
      %p82 = scmp.ne.s32.totalorder %s71, %s74
      %p83 = scmp.eq.s32.totalorder %s22, 1
      %p84 = por %p82, %p83
      %p85 = scmp.ne.s32.totalorder %s74, %s75
      %p86 = scmp.eq.s32.totalorder %s22, 0
      %p87 = por %p85, %p86
      %p88 = scmp.ne.s32.totalorder %s74, %s75
      %p89 = scmp.eq.s32.totalorder %s23, 1
      %p90 = por %p88, %p89
      %p92 = scmp.ne.s32.totalorder %s75, %s91
      %p93 = scmp.eq.s32.totalorder %s23, 0
      %p94 = por %p92, %p93
      %s96 = sadd.s32 %s95, 1
      %p99 = scmp.eq.s32.totalorder %s17, 1
      %p100 = scmp.ne.s32.totalorder %s95, %s97
      %p101 = scmp.eq.s32.totalorder %s17, 0
      %p102 = por %p100, %p101
      %p103 = scmp.ne.s32.totalorder %s95, %s97
      %p104 = scmp.eq.s32.totalorder %s22, 1
      %p105 = por %p103, %p104
      %p106 = scmp.ne.s32.totalorder %s97, %s98
      %p107 = scmp.eq.s32.totalorder %s22, 0
      %p108 = por %p106, %p107
      %p109 = scmp.ne.s32.totalorder %s97, %s98
      %p110 = scmp.eq.s32.totalorder %s23, 1
      %p111 = por %p109, %p110
      %p113 = scmp.ne.s32.totalorder %s98, %s112
      %p114 = scmp.eq.s32.totalorder %s23, 0
      %p115 = por %p113, %p114
      %s117 = sadd.s32 %s116, 1
      %p120 = scmp.eq.s32.totalorder %s17, 1
      %p121 = scmp.ne.s32.totalorder %s116, %s118
      %p122 = scmp.eq.s32.totalorder %s17, 0
      %p123 = por %p121, %p122
      %p124 = scmp.ne.s32.totalorder %s116, %s118
      %p125 = scmp.eq.s32.totalorder %s22, 1
      %p126 = por %p124, %p125
      %p127 = scmp.ne.s32.totalorder %s118, %s119
      %p128 = scmp.eq.s32.totalorder %s22, 0
      %p129 = por %p127, %p128
      %p130 = scmp.ne.s32.totalorder %s118, %s119
      %p131 = scmp.eq.s32.totalorder %s23, 1
      %p132 = por %p130, %p131
      %p134 = scmp.ne.s32.totalorder %s119, %s133
      %p135 = scmp.eq.s32.totalorder %s23, 0
      %p136 = por %p134, %p135
      %s138 = sadd.s32 %s137, 1
      %p141 = scmp.eq.s32.totalorder %s17, 1
      %p142 = scmp.ne.s32.totalorder %s137, %s139
      %p143 = scmp.eq.s32.totalorder %s17, 0
      %p144 = por %p142, %p143
      %p145 = scmp.ne.s32.totalorder %s137, %s139
      %p146 = scmp.eq.s32.totalorder %s22, 1
      %p147 = por %p145, %p146
      %p148 = scmp.ne.s32.totalorder %s139, %s140
      %p149 = scmp.eq.s32.totalorder %s22, 0
      %p150 = por %p148, %p149
      %p151 = scmp.ne.s32.totalorder %s139, %s140
      %p152 = scmp.eq.s32.totalorder %s23, 1
      %p153 = por %p151, %p152
      %p155 = scmp.ne.s32.totalorder %s140, %s154
      %p156 = scmp.eq.s32.totalorder %s23, 0
      %p157 = por %p155, %p156
      %s159 = sadd.s32 %s158, 1
      %p162 = scmp.eq.s32.totalorder %s17, 1
      %p163 = scmp.ne.s32.totalorder %s158, %s160
      %p164 = scmp.eq.s32.totalorder %s17, 0
      %p165 = por %p163, %p164
      %p166 = scmp.ne.s32.totalorder %s158, %s160
      %p167 = scmp.eq.s32.totalorder %s22, 1
      %p168 = por %p166, %p167
      %p169 = scmp.ne.s32.totalorder %s160, %s161
      %p170 = scmp.eq.s32.totalorder %s22, 0
      %p171 = por %p169, %p170
      %p172 = scmp.ne.s32.totalorder %s160, %s161
      %p173 = scmp.eq.s32.totalorder %s23, 1
      %p174 = por %p172, %p173
      %p176 = scmp.ne.s32.totalorder %s161, %s175
      %p177 = scmp.eq.s32.totalorder %s23, 0
      %p178 = por %p176, %p177
      %s180 = sadd.s32 %s179, 1
      %p183 = scmp.eq.s32.totalorder %s17, 1
      %p184 = scmp.ne.s32.totalorder %s179, %s181
      %p185 = scmp.eq.s32.totalorder %s17, 0
      %p186 = por %p184, %p185
      %p187 = scmp.ne.s32.totalorder %s179, %s181
      %p188 = scmp.eq.s32.totalorder %s22, 1
      %p189 = por %p187, %p188
      %p190 = scmp.ne.s32.totalorder %s181, %s182
      %p191 = scmp.eq.s32.totalorder %s22, 0
      %p192 = por %p190, %p191
      %p193 = scmp.ne.s32.totalorder %s181, %s182
      %p194 = scmp.eq.s32.totalorder %s23, 1
      %p195 = por %p193, %p194
      %p197 = scmp.ne.s32.totalorder %s182, %s196
      %p198 = scmp.eq.s32.totalorder %s23, 0
      %p199 = por %p197, %p198
      %s201 = sadd.s32 %s200, 1
      %p204 = scmp.eq.s32.totalorder %s17, 1
      %p205 = scmp.ne.s32.totalorder %s200, %s202
      %p206 = scmp.eq.s32.totalorder %s17, 0
      %p207 = por %p205, %p206
      %p208 = scmp.ne.s32.totalorder %s200, %s202
      %p209 = scmp.eq.s32.totalorder %s22, 1
      %p210 = por %p208, %p209
      %p211 = scmp.ne.s32.totalorder %s202, %s203
      %p212 = scmp.eq.s32.totalorder %s22, 0
      %p213 = por %p211, %p212
      %p214 = scmp.ne.s32.totalorder %s202, %s203
      %p215 = scmp.eq.s32.totalorder %s23, 1
      %p216 = por %p214, %p215
      %p218 = scmp.ne.s32.totalorder %s203, %s217
      %p219 = scmp.eq.s32.totalorder %s23, 0
      %p220 = por %p218, %p219
      %s221 = ssub.s32 %s24, %s36
      %s222 = ssub.s32 %s25, %s32
      %s223 = sor.u32 %s221, %s222
      %p224 = scmp.eq.s32.totalorder %s223, 0
      %s226 = sadd.s32 %s225, 1
      %s227 = scalar_select %p224, %s225, %s226
      %p230 = pneg %p224
      %p231 = scmp.eq.s32.totalorder %s17, 1
      %p232 = por %p230, %p231
      %p233 = scmp.ne.s32.totalorder %s225, %s228
      %p234 = scmp.eq.s32.totalorder %s17, 0
      %p235 = por %p233, %p234
      %p236 = scmp.ne.s32.totalorder %s225, %s228
      %p237 = scmp.eq.s32.totalorder %s22, 1
      %p238 = por %p236, %p237
      %p239 = scmp.ne.s32.totalorder %s228, %s229
      %p240 = scmp.eq.s32.totalorder %s22, 0
      %p241 = por %p239, %p240
      %p242 = scmp.ne.s32.totalorder %s228, %s229
      %p243 = scmp.eq.s32.totalorder %s23, 1
      %p244 = por %p242, %p243
      %p246 = scmp.ne.s32.totalorder %s229, %s245
      %p247 = scmp.eq.s32.totalorder %s23, 0
      %p248 = por %p246, %p247
      %p249 = scmp.le.s32.totalorder 1, %s17
      %p250 = scmp.lt.s32.totalorder %s17, 3
      %p251 = pnand %p249, %p250
      %p252 = pneg %p251
      // Predicated region
      $region9: #{cnnblock_forward.1} parent=5 // pred_check
        _
      $region10: #{cnnblock_forward.1} parent=5 // pred_check_branch
        %254 = sbr.rel (%p251) target = $region12
      $region11: #{cnnblock_forward.1} parent=5 // pred_region
        %s255 = ssub.s32 %s17, 1
        // Predicated region
        $region13: #{cnnblock_forward.1} parent=11 // pred_check
          %p256 = pneg %p108
        $region14: #{cnnblock_forward.1} parent=11 // pred_check_branch
          %258 = sbr.rel (%p256) target = $region16
        $region15: #{cnnblock_forward.1} parent=11 // pred_region
          _
        $region16: #{cnnblock_forward.1} parent=11 // pred_fallthru
          _
        // Predicated region
        $region17: #{cnnblock_forward.1} parent=11 // pred_check
          %p259 = pneg %p129
        $region18: #{cnnblock_forward.1} parent=11 // pred_check_branch
          %261 = sbr.rel (%p259) target = $region20
        $region19: #{cnnblock_forward.1} parent=11 // pred_region
          _
        $region20: #{cnnblock_forward.1} parent=11 // pred_fallthru
          _
        // Predicated region
        $region21: #{cnnblock_forward.1} parent=11 // pred_check
          %p262 = pneg %p150
        $region22: #{cnnblock_forward.1} parent=11 // pred_check_branch
          %264 = sbr.rel (%p262) target = $region24
        $region23: #{cnnblock_forward.1} parent=11 // pred_region
          _
        $region24: #{cnnblock_forward.1} parent=11 // pred_fallthru
          _
        // Predicated region
        $region25: #{cnnblock_forward.1} parent=11 // pred_check
          %p265 = pneg %p171
        $region26: #{cnnblock_forward.1} parent=11 // pred_check_branch
          %267 = sbr.rel (%p265) target = $region28
        $region27: #{cnnblock_forward.1} parent=11 // pred_region
          _
        $region28: #{cnnblock_forward.1} parent=11 // pred_fallthru
          _
        // Predicated region
        $region29: #{cnnblock_forward.1} parent=11 // pred_check
          %p268 = pneg %p192
        $region30: #{cnnblock_forward.1} parent=11 // pred_check_branch
          %270 = sbr.rel (%p268) target = $region32
        $region31: #{cnnblock_forward.1} parent=11 // pred_region
          _
        $region32: #{cnnblock_forward.1} parent=11 // pred_fallthru
          _
        // Predicated region
        $region33: #{cnnblock_forward.1} parent=11 // pred_check
          %p271 = pneg %p213
        $region34: #{cnnblock_forward.1} parent=11 // pred_check_branch
          %273 = sbr.rel (%p271) target = $region36
        $region35: #{cnnblock_forward.1} parent=11 // pred_region
          _
        $region36: #{cnnblock_forward.1} parent=11 // pred_fallthru
          _
      $region12: #{cnnblock_forward.1} parent=5 // pred_fallthru
        _
      %p274 = scmp.lt.s32.totalorder %s17, 2
      // Predicated region
      $region37: #{cnnblock_forward.1} parent=5 // pred_check
        %p275 = pneg %p274
      $region38: #{cnnblock_forward.1} parent=5 // pred_check_branch
        %277 = sbr.rel (%p275) target = $region40
      $region39: #{cnnblock_forward.1} parent=5 // pred_region
        // Predicated region
        $region41: #{cnnblock_forward.1} parent=39 // pred_check
          %p278 = pneg %p51
        $region42: #{cnnblock_forward.1} parent=39 // pred_check_branch
          %280 = sbr.rel (%p278) target = $region44
        $region43: #{cnnblock_forward.1} parent=39 // pred_region
          %p281 = scmp.lt.s32.totalorder %s24, 1
          %s282 = scalar_select %p281, %s24, 1
          %p283 = scmp.lt.s32.totalorder %s25, 1
          %s284 = scalar_select %p283, %s25, 1
          %s285 = smul.addr %s282, 2
          %s286 = sadd.s32 %s284, %s285
          %s287 = smul.addr %s286, 4
          %s288 = scalar_lea.vmem %s0, %s287
        $region44: #{cnnblock_forward.1} parent=39 // pred_fallthru
          _
        // Predicated region
        $region45: #{cnnblock_forward.1} parent=39 // pred_check
          %p289 = pneg %p81
        $region46: #{cnnblock_forward.1} parent=39 // pred_check_branch
          %291 = sbr.rel (%p289) target = $region48
        $region47: #{cnnblock_forward.1} parent=39 // pred_region
          %s292 = sadd.s32 %s25, 1
          %p293 = scmp.lt.s32.totalorder %s24, 1
          %s294 = scalar_select %p293, %s24, 1
          %p295 = scmp.lt.s32.totalorder %s292, 1
          %s296 = scalar_select %p295, %s292, 1
          %s297 = smul.addr %s294, 2
          %s298 = sadd.s32 %s296, %s297
          %s299 = smul.addr %s298, 4
          %s300 = scalar_lea.vmem %s1, %s299
          %s301 = sadd.s32 %s25, 1
        $region48: #{cnnblock_forward.1} parent=39 // pred_fallthru
          _
      $region40: #{cnnblock_forward.1} parent=5 // pred_fallthru
        _
      %p302 = scmp.le.s32.totalorder 1, %s17
      %p303 = scmp.lt.s32.totalorder %s17, 3
      %p304 = pnand %p302, %p303
      %p305 = pneg %p304
      // Predicated region
      $region49: #{cnnblock_forward.1} parent=5 // pred_check
        _
      $region50: #{cnnblock_forward.1} parent=5 // pred_check_branch
        %307 = sbr.rel (%p304) target = $region52
      $region51: #{cnnblock_forward.1} parent=5 // pred_region
        %s308 = ssub.s32 %s17, 1
        %p309 = scmp.lt.s32.totalorder %s26, 1
        %s310 = scalar_select %p309, %s26, 1
        %p311 = scmp.lt.s32.totalorder %s27, 1
        %s312 = scalar_select %p311, %s27, 1
        %s313 = smul.addr %s310, 2
        %s314 = sadd.s32 %s312, %s313
        %s315 = smul.addr %s314, 4
        %s316 = scalar_lea.vmem %s0, %s315
        %p317 = pneg %p57
        %p318 = pneg %p54
        %s319 = sadd.s32 %s27, 1
        %p320 = scmp.lt.s32.totalorder %s26, 1
        %s321 = scalar_select %p320, %s26, 1
        %p322 = scmp.lt.s32.totalorder %s319, 1
        %s323 = scalar_select %p322, %s319, 1
        %s324 = smul.addr %s321, 2
        %s325 = sadd.s32 %s323, %s324
        %s326 = smul.addr %s325, 4
        %s327 = scalar_lea.vmem %s1, %s326
        %p328 = pneg %p87
        %p329 = pneg %p84
        %p330 = pneg %p108
        %p331 = pneg %p105
        %p332 = pneg %p129
        %p333 = pneg %p126
        %p334 = pneg %p150
        %p335 = pneg %p147
        %p336 = pneg %p171
        %p337 = pneg %p168
        %p338 = pneg %p192
        %p339 = pneg %p189
        %p340 = pneg %p213
        %p341 = pneg %p210
        %p342 = pneg %p241
        %p343 = pneg %p238
        %s344 = sand.u32 %s228, 1
        %s345 = scalar_lea.sflag [#allocation3], %s344
        %s346 = sand.u32 %s228, 1
        %s347 = smul.addr %s346, 8
        %s348 = scalar_lea.vmem [#allocation2], %s347
        %p349 = scmp.lt.s32.totalorder %s26, 1
        %s350 = scalar_select %p349, %s26, 1
        %p351 = scmp.lt.s32.totalorder %s27, 1
        %s352 = scalar_select %p351, %s27, 1
        %s353 = smul.addr %s350, 2
        %s354 = sadd.s32 %s352, %s353
        %s355 = smul.addr %s354, 4
        %s356 = scalar_lea.vmem %s0, %s355
        %s357 = sadd.s32 %s27, 1
        %p358 = scmp.lt.s32.totalorder %s26, 1
        %s359 = scalar_select %p358, %s26, 1
        %p360 = scmp.lt.s32.totalorder %s357, 1
        %s361 = scalar_select %p360, %s357, 1
        %s362 = smul.addr %s359, 2
        %s363 = sadd.s32 %s361, %s362
        %s364 = smul.addr %s363, 4
        %s365 = scalar_lea.vmem %s1, %s364
        %s366 = sadd.s32 %s27, 1
        %v368 = vld [vmem:[%s356] sm:$0xf]
        %v369 = vld [vmem:[%s2] sm:$0xf]
        %v370 = vld [vmem:[%s2 + $0x4] sm:$0xf]
        %v371 = vld [vmem:[%s365] sm:$0xf]
        %s372 = scalar_lea.vmem %s2, 8
        %v373 = vld [vmem:[%s372] sm:$0xf]
        %v374 = vld [vmem:[%s372 + $0x4] sm:$0xf]
        %v377 = vunpack.c.l.b16 %v373
        %v378 = vunpack.c.l.b16 %v374
        %v379 = vpack.c.b16 %v378, %v377
        %382 = vrot.lane.b32.xlu0 %v368, 127
        %v383 = vpop.permute.xlu0 %382
        %384 = vrot.lane.b32.xlu0 %v371, 127
        %v385 = vpop.permute.xlu0 %384
        %vm386 = vcmask 1039360
        %v387 = vsel %vm386, %v383, %v385
        %vm388 = vcmask 64512
        %v390 = vsel %vm388, %v379, 0
        %vm392 = vcmask 1043456
        %v394 = vsel %vm392, %v387, 0
        %396 = vmatprep.subr.bf16.mxu0 0
        %397 = vmatpush1.bf16.msra.mxu0 %v394
        %398 = vmatprep.subr.bf16.mxu0 0
        %399 = vmatpush1.bf16.msra.mxu0 0
        %400 = vmatprep.subr.bf16.mxu0 0
        %401 = vmatpush1.bf16.msra.mxu0 0
        %402 = vmatprep.subr.bf16.mxu0 0
        %403 = vmatpush1.bf16.msra.mxu0 0
        %404 = vmatprep.subr.bf16.mxu0 0
        %405 = vmatpush1.bf16.msra.mxu0 0
        %406 = vmatprep.subr.bf16.mxu0 0
        %407 = vmatpush1.bf16.msra.mxu0 0
        %408 = vmatprep.subr.bf16.mxu0 0
        %409 = vmatpush1.bf16.msra.mxu0 0
        %410 = vmatprep.subr.bf16.mxu0 0
        %411 = vmatpush1.bf16.msra.mxu0 0
        %412 = vmatprep.subr.bf16.mxu0 0
        %413 = vmatpush1.bf16.msra.mxu0 0
        %414 = vmatprep.subr.bf16.mxu0 0
        %415 = vmatpush1.bf16.msra.mxu0 0
        %416 = vmatprep.subr.bf16.mxu0 0
        %417 = vmatpush1.bf16.msra.mxu0 0
        %418 = vmatprep.subr.bf16.mxu0 0
        %419 = vmatpush1.bf16.msra.mxu0 0
        %420 = vmatprep.subr.bf16.mxu0 0
        %421 = vmatpush1.bf16.msra.mxu0 0
        %422 = vmatprep.subr.bf16.mxu0 0
        %423 = vmatpush1.bf16.msra.mxu0 0
        %424 = vmatprep.subr.bf16.mxu0 0
        %425 = vmatpush1.bf16.msra.mxu0 0
        %426 = vmatprep.subr.bf16.mxu0 0
        %427 = vmatpush1.bf16.msra.mxu0 0
        %428 = vmatprep.mubr.bf16.mxu0 0
        %429 = vmatmul.mubr.bf16.gmra.mrb[0].mxu0 %v390
        %v430 = vpop.f32.mrb[0].mxu0
        %v431 = vadd.f32 0.0, %v430
        %v432 = vpop.f32.mrb[0].mxu0
        %v433 = vpop.f32.mrb[0].mxu0
        %v434 = vadd.f32 0.0, %v433
        %v435 = vpop.f32.mrb[0].mxu0
        %436 = vdwg.mxu0
        %v439 = vunpack.c.l.b16 %v369
        %v440 = vunpack.c.l.b16 %v370
        %v441 = vpack.c.b16 %v440, %v439
        %v443 = vsel %vm388, %v441, 0
        %v446 = vsel %vm392, %v368, 0
        %448 = vmatprep.subr.bf16.mxu0 0
        %449 = vmatpush1.bf16.msra.mxu0 %v446
        %450 = vmatprep.subr.bf16.mxu0 0
        %451 = vmatpush1.bf16.msra.mxu0 0
        %452 = vmatprep.subr.bf16.mxu0 0
        %453 = vmatpush1.bf16.msra.mxu0 0
        %454 = vmatprep.subr.bf16.mxu0 0
        %455 = vmatpush1.bf16.msra.mxu0 0
        %456 = vmatprep.subr.bf16.mxu0 0
        %457 = vmatpush1.bf16.msra.mxu0 0
        %458 = vmatprep.subr.bf16.mxu0 0
        %459 = vmatpush1.bf16.msra.mxu0 0
        %460 = vmatprep.subr.bf16.mxu0 0
        %461 = vmatpush1.bf16.msra.mxu0 0
        %462 = vmatprep.subr.bf16.mxu0 0
        %463 = vmatpush1.bf16.msra.mxu0 0
        %464 = vmatprep.subr.bf16.mxu0 0
        %465 = vmatpush1.bf16.msra.mxu0 0
        %466 = vmatprep.subr.bf16.mxu0 0
        %467 = vmatpush1.bf16.msra.mxu0 0
        %468 = vmatprep.subr.bf16.mxu0 0
        %469 = vmatpush1.bf16.msra.mxu0 0
        %470 = vmatprep.subr.bf16.mxu0 0
        %471 = vmatpush1.bf16.msra.mxu0 0
        %472 = vmatprep.subr.bf16.mxu0 0
        %473 = vmatpush1.bf16.msra.mxu0 0
        %474 = vmatprep.subr.bf16.mxu0 0
        %475 = vmatpush1.bf16.msra.mxu0 0
        %476 = vmatprep.subr.bf16.mxu0 0
        %477 = vmatpush1.bf16.msra.mxu0 0
        %478 = vmatprep.subr.bf16.mxu0 0
        %479 = vmatpush1.bf16.msra.mxu0 0
        %480 = vmatprep.mubr.bf16.mxu0 0
        %481 = vmatmul.mubr.bf16.gmra.mrb[0].mxu0 %v443
        %v482 = vpop.f32.mrb[0].mxu0
        %v483 = vadd.f32 %v431, %v482
        %v484 = vpop.f32.mrb[0].mxu0
        %v485 = vpop.f32.mrb[0].mxu0
        %v486 = vadd.f32 %v434, %v485
        %v487 = vpop.f32.mrb[0].mxu0
        %488 = vdwg.mxu0
        %v489 = vld [vmem:[%s5] sm:$0xff]
        %v490 = vld [vmem:[%s5 + $0x8] sm:$0xff]
        %492 = vset.pattern.permute.xlu0 0
        %493 = vperm.xlu0 %492, %v489
        %v494 = vpop.permute.xlu0 %493
        %497 = vset.pattern.permute.xlu0 0
        %498 = vperm.xlu0 %497, %v490
        %v499 = vpop.permute.xlu0 %498
        %v501 = vadd.f32 %v483, %v494
        %v502 = vadd.f32 %v486, %v499
        %v503 = vmax.f32 %v501, 0.0
        %v504 = vld [vmem:[%s3] sm:$0xf]
        %v505 = vld [vmem:[%s3 + $0x4] sm:$0xf]
        %v506 = vpack.c.bf16 %v503, %v503
        %v507 = vld [vmem:[%s6] sm:$0xff]
        %v508 = vld [vmem:[%s6 + $0x8] sm:$0xff]
        %510 = vset.pattern.permute.xlu0 0
        %511 = vperm.xlu0 %510, %v507
        %v512 = vpop.permute.xlu0 %511
        %515 = vset.pattern.permute.xlu0 0
        %516 = vperm.xlu0 %515, %v508
        %v517 = vpop.permute.xlu0 %516
        %v521 = vunpack.c.l.b16 %v504
        %v522 = vunpack.c.l.b16 %v505
        %v523 = vpack.c.b16 %v522, %v521
        %v525 = vsel %vm388, %v523, 0
        %v528 = vsel %vm392, %v506, 0
        %530 = vmatprep.subr.bf16.mxu0 0
        %531 = vmatpush1.bf16.msra.mxu0 %v528
        %532 = vmatprep.subr.bf16.mxu0 0
        %533 = vmatpush1.bf16.msra.mxu0 0
        %534 = vmatprep.subr.bf16.mxu0 0
        %535 = vmatpush1.bf16.msra.mxu0 0
        %536 = vmatprep.subr.bf16.mxu0 0
        %537 = vmatpush1.bf16.msra.mxu0 0
        %538 = vmatprep.subr.bf16.mxu0 0
        %539 = vmatpush1.bf16.msra.mxu0 0
        %540 = vmatprep.subr.bf16.mxu0 0
        %541 = vmatpush1.bf16.msra.mxu0 0
        %542 = vmatprep.subr.bf16.mxu0 0
        %543 = vmatpush1.bf16.msra.mxu0 0
        %544 = vmatprep.subr.bf16.mxu0 0
        %545 = vmatpush1.bf16.msra.mxu0 0
        %546 = vmatprep.subr.bf16.mxu0 0
        %547 = vmatpush1.bf16.msra.mxu0 0
        %548 = vmatprep.subr.bf16.mxu0 0
        %549 = vmatpush1.bf16.msra.mxu0 0
        %550 = vmatprep.subr.bf16.mxu0 0
        %551 = vmatpush1.bf16.msra.mxu0 0
        %552 = vmatprep.subr.bf16.mxu0 0
        %553 = vmatpush1.bf16.msra.mxu0 0
        %554 = vmatprep.subr.bf16.mxu0 0
        %555 = vmatpush1.bf16.msra.mxu0 0
        %556 = vmatprep.subr.bf16.mxu0 0
        %557 = vmatpush1.bf16.msra.mxu0 0
        %558 = vmatprep.subr.bf16.mxu0 0
        %559 = vmatpush1.bf16.msra.mxu0 0
        %560 = vmatprep.subr.bf16.mxu0 0
        %561 = vmatpush1.bf16.msra.mxu0 0
        %562 = vmatprep.mubr.bf16.mxu0 0
        %563 = vmatmul.mubr.bf16.gmra.mrb[0].mxu0 %v525
        %v564 = vpop.f32.mrb[0].mxu0
        %v565 = vadd.f32 %v512, %v564
        %v566 = vpop.f32.mrb[0].mxu0
        %v567 = vpop.f32.mrb[0].mxu0
        %v568 = vadd.f32 %v517, %v567
        %v569 = vpop.f32.mrb[0].mxu0
        %570 = vdwg.mxu0
        %v571 = vmax.f32 %v565, 0.0
        %v572 = vmax.f32 %v568, 0.0
        %v573 = vld [vmem:[%s4] sm:$0xf]
        %v574 = vpack.c.bf16 %v572, %v571
        %v575 = vld [vmem:[%s7] sm:$0xff]
        %577 = vset.pattern.permute.xlu0 0
        %578 = vperm.xlu0 %577, %v575
        %v579 = vpop.permute.xlu0 %578
        %vm581 = vcmask 130048
        %v583 = vsel %vm581, %v573, 0
        %585 = vmatprep.subr.bf16.mxu0 0
        %586 = vmatpush1.bf16.msra.mxu0 %v574
        %587 = vmatprep.subr.bf16.mxu0 0
        %588 = vmatpush1.bf16.msra.mxu0 0
        %589 = vmatprep.subr.bf16.mxu0 0
        %590 = vmatpush1.bf16.msra.mxu0 0
        %591 = vmatprep.subr.bf16.mxu0 0
        %592 = vmatpush1.bf16.msra.mxu0 0
        %593 = vmatprep.subr.bf16.mxu0 0
        %594 = vmatpush1.bf16.msra.mxu0 0
        %595 = vmatprep.subr.bf16.mxu0 0
        %596 = vmatpush1.bf16.msra.mxu0 0
        %597 = vmatprep.subr.bf16.mxu0 0
        %598 = vmatpush1.bf16.msra.mxu0 0
        %599 = vmatprep.subr.bf16.mxu0 0
        %600 = vmatpush1.bf16.msra.mxu0 0
        %601 = vmatprep.subr.bf16.mxu0 0
        %602 = vmatpush1.bf16.msra.mxu0 0
        %603 = vmatprep.subr.bf16.mxu0 0
        %604 = vmatpush1.bf16.msra.mxu0 0
        %605 = vmatprep.subr.bf16.mxu0 0
        %606 = vmatpush1.bf16.msra.mxu0 0
        %607 = vmatprep.subr.bf16.mxu0 0
        %608 = vmatpush1.bf16.msra.mxu0 0
        %609 = vmatprep.subr.bf16.mxu0 0
        %610 = vmatpush1.bf16.msra.mxu0 0
        %611 = vmatprep.subr.bf16.mxu0 0
        %612 = vmatpush1.bf16.msra.mxu0 0
        %613 = vmatprep.subr.bf16.mxu0 0
        %614 = vmatpush1.bf16.msra.mxu0 0
        %615 = vmatprep.subr.bf16.mxu0 0
        %616 = vmatpush1.bf16.msra.mxu0 0
        %617 = vmatprep.mubr.bf16.mxu0 0
        %618 = vmatmul.mubr.bf16.gmra.mrb[0].mxu0 %v583
        %v619 = vpop.f32.mrb[0].mxu0
        %v620 = vadd.f32 %v579, %v619
        %v621 = vpop.f32.mrb[0].mxu0
        %v622 = vpop.f32.mrb[0].mxu0
        %v623 = vpop.f32.mrb[0].mxu0
        %624 = vdwg.mxu0
        %v625 = vadd.f32 %v620, %v502
        %v626 = vmax.f32 %v625, 0.0
        %627 = vst [vmem:[%s348] sm:$0xff] %v626
        %s628 = sand.u32 %s228, 1
        %s629 = scalar_lea.sflag [#allocation3], %s628
        %s630 = sand.u32 %s228, 1
        %s631 = smul.addr %s630, 8
        %s632 = scalar_lea.vmem [#allocation2], %s631
        // Predicated region
        $region53: #{cnnblock_forward.1} parent=51 // pred_check
          %p633 = pneg %p238
        $region54: #{cnnblock_forward.1} parent=51 // pred_check_branch
          %635 = sbr.rel (%p633) target = $region56
        $region55: #{cnnblock_forward.1} parent=51 // pred_region
          %s637 = ssub.s32 128, 128
          %638 = vsyncadd %s629, %s637
          %s639 = sadd.s32 %s27, %s26
          %s640 = smul.addr %s639, 128
          %s641 = scalar_lea.hbm %s8, %s640
          %s643 = sshll.u32 %s632, 4
          %s644 = int_to_ptr.vmem [resolvable:$true] %s643
          %646 = dma.vmem_to_hbm [thread:$0]  %s644, 128, %s641, %s629
        $region56: #{cnnblock_forward.1} parent=51 // pred_fallthru
          _
      $region52: #{cnnblock_forward.1} parent=5 // pred_fallthru
        _
      %p647 = scmp.le.s32.totalorder 2, %s17
      // Predicated region
      $region57: #{cnnblock_forward.1} parent=5 // pred_check
        %p648 = pneg %p647
      $region58: #{cnnblock_forward.1} parent=5 // pred_check_branch
        %650 = sbr.rel (%p648) target = $region60
      $region59: #{cnnblock_forward.1} parent=5 // pred_region
        %s651 = ssub.s32 %s17, 2
        // Predicated region
        $region61: #{cnnblock_forward.1} parent=59 // pred_check
          %p652 = pneg %p244
        $region62: #{cnnblock_forward.1} parent=59 // pred_check_branch
          %654 = sbr.rel (%p652) target = $region64
        $region63: #{cnnblock_forward.1} parent=59 // pred_region
          %s655 = sand.u32 %s229, 1
          %s656 = scalar_lea.sflag [#allocation3], %s655
          %s657 = sand.u32 %s229, 1
          %s658 = smul.addr %s657, 8
          %s659 = scalar_lea.vmem [#allocation2], %s658
          %660 = dma.done %s656, 128
        $region64: #{cnnblock_forward.1} parent=59 // pred_fallthru
          _
      $region60: #{cnnblock_forward.1} parent=5 // pred_fallthru
        _
    $region6: #{cnnblock_forward.1} parent=1 // loop_footer
      %s21 = sadd.s32 1, %s17
    $region7: #{cnnblock_forward.1} parent=1 // loop_footer_branch
      %16 = sbr.rel target = $region3
    $region8: #{cnnblock_forward.1} parent=1 // loop_exit
      _
    %661 = vsyncpa [#allocation3], 1
    %s662 = scalar_lea.sflag [#allocation3], 1
    %663 = vsyncpa %s662, 1

</llo_original>
